<compile_context>
chip_gen: v7x
topology: tpu7x:2x2x1
jax: 0.10.0
libtpu: 0.0.40
codegen_flags: <defaults>
</compile_context>

<pallas_src>
import jax
import jax.numpy as jnp
from jax.experimental import pallas as pl
from jax.experimental.pallas import tpu as pltpu


def agent_forward_kernel(x_ref, w1_ref, b1_ref, w2_ref, b2_ref, out_ref):
    # fc1: [B, S] @ [S, H] + [1, H] -> relu
    h = jnp.dot(x_ref[...], w1_ref[...], preferred_element_type=jnp.float32)
    h = jnp.maximum(h + b1_ref[...], 0.0)
    # fc2: [B, H] @ [H, A] + [1, A] -> tanh
    y = jnp.dot(h, w2_ref[...], preferred_element_type=jnp.float32)
    out_ref[...] = jnp.tanh(y + b2_ref[...]).astype(out_ref.dtype)


def agent_forward(state, w1, b1, w2, b2):
    """Per-step path. state: [B, S] f32; w1: [S, H]; b1: [H]; w2: [H, A]; b2: [A].

    Grid-less: the whole problem is a few KiB, so everything lives in VMEM for a
    single kernel invocation with zero pipeline/grid overhead.
    """
    B, S = state.shape
    H = w1.shape[1]
    A = w2.shape[1]
    vmem = pl.BlockSpec(memory_space=pltpu.MemorySpace.VMEM)
    return pl.pallas_call(
        agent_forward_kernel,
        out_shape=jax.ShapeDtypeStruct((B, A), jnp.float32),
        in_specs=[vmem, vmem, vmem, vmem, vmem],
        out_specs=vmem,
    )(state, w1, b1.reshape(1, H), w2, b2.reshape(1, A))


def agent_forward_batched(states, w1, b1, w2, b2, *, row_tile=128):
    """Batched path: evaluate many states (stacked timesteps / candidates) at once.

    Rows are tiled into `row_tile` blocks on a "parallel" grid axis; weights use
    constant index_maps so they stay resident in VMEM across grid steps. The
    action dim is zero-padded to 128 lanes inside the call (unmasked stores) and
    sliced back off here.
    """
    B, S = states.shape
    H = w1.shape[1]
    A = w2.shape[1]

    LANE = 128
    A_pad = ((A + LANE - 1) // LANE) * LANE
    B_pad = ((B + row_tile - 1) // row_tile) * row_tile

    x = jnp.pad(states, ((0, B_pad - B), (0, 0)))
    w2_p = jnp.pad(w2, ((0, 0), (0, A_pad - A)))
    b2_p = jnp.pad(b2, (0, A_pad - A)).reshape(1, A_pad)
    b1_2d = b1.reshape(1, H)

    out = pl.pallas_call(
        agent_forward_kernel,
        out_shape=jax.ShapeDtypeStruct((B_pad, A_pad), jnp.float32),
        grid=(B_pad // row_tile,),
        in_specs=[
            pl.BlockSpec((row_tile, S), lambda i: (i, 0)),   # state rows
            pl.BlockSpec((S, H), lambda i: (0, 0)),          # w1 (resident)
            pl.BlockSpec((1, H), lambda i: (0, 0)),          # b1 (resident)
            pl.BlockSpec((H, A_pad), lambda i: (0, 0)),      # w2 (resident)
            pl.BlockSpec((1, A_pad), lambda i: (0, 0)),      # b2 (resident)
        ],
        out_specs=pl.BlockSpec((row_tile, A_pad), lambda i: (i, 0)),
        compiler_params=pltpu.CompilerParams(
            dimension_semantics=("parallel",)),
    )(x, w1, b1_2d, w2_p, b2_p)
    return out[:B, :A]


def reference_forward(state, w1, b1, w2, b2):
    h = jnp.maximum(state @ w1 + b1, 0.0)
    return jnp.tanh(h @ w2 + b2)


if __name__ == "__main__":
    # LunarLander-like sizes: s_size=8, a_size=4, h_size=8 (module default).
    s_size, h_size, a_size = 8, 8, 4
    batch = 2

    key = jax.random.PRNGKey(0)
    k_x, k_w1, k_b1, k_w2, k_b2, k_big = jax.random.split(key, 6)

    state = jax.random.normal(k_x, (batch, s_size), dtype=jnp.float32)
    # PyTorch Linear weight is [out, in]; stored transposed as [in, out] here.
    w1 = 0.1 * jax.random.normal(k_w1, (s_size, h_size), dtype=jnp.float32)
    b1 = 0.1 * jax.random.normal(k_b1, (h_size,), dtype=jnp.float32)
    w2 = 0.1 * jax.random.normal(k_w2, (h_size, a_size), dtype=jnp.float32)
    b2 = 0.1 * jax.random.normal(k_b2, (a_size,), dtype=jnp.float32)

    # --- per-step path (grid-less) ---
    out = jax.block_until_ready(agent_forward(state, w1, b1, w2, b2))
    ref = reference_forward(state, w1, b1, w2, b2)
    assert out.shape == (batch, a_size)
    assert jnp.allclose(out, ref, atol=1e-5, rtol=1e-5), (out, ref)

    # --- batched path (many states / hill-climbing candidates at once) ---
    big_batch = 512
    states = jax.random.normal(k_big, (big_batch, s_size), dtype=jnp.float32)
    out_b = jax.block_until_ready(agent_forward_batched(states, w1, b1, w2, b2))
    ref_b = reference_forward(states, w1, b1, w2, b2)
    assert out_b.shape == (big_batch, a_size)
    assert jnp.allclose(out_b, ref_b, atol=1e-5, rtol=1e-5)

    # `act` equivalent (argmax over action outputs) — plain JAX glue, not in-kernel.
    _ = jnp.argmax(out, axis=-1)

    print("KERNEL_OK")
</pallas_src>

<mosaic_0001>
module attributes {stable_mosaic.version = 11 : i64} {
  func.func @agent_forward_kernel(%arg0: memref<2x8xf32, #tpu.memory_space<vmem>>, %arg1: memref<8x8xf32, #tpu.memory_space<vmem>>, %arg2: memref<1x8xf32, #tpu.memory_space<vmem>>, %arg3: memref<8x4xf32, #tpu.memory_space<vmem>>, %arg4: memref<1x4xf32, #tpu.memory_space<vmem>>, %arg5: memref<2x4xf32, #tpu.memory_space<vmem>>) attributes {dimension_semantics = [], scalar_prefetch = 0 : i64, scratch_operands = 0 : i64, tpu.core_type = #tpu.core_type<tc>} {
    %c0 = arith.constant 0 : index
    %c0_0 = arith.constant 0 : index
    %0 = vector.load %arg0[%c0, %c0_0] : memref<2x8xf32, #tpu.memory_space<vmem>>, vector<2x8xf32>
    %c0_1 = arith.constant 0 : index
    %c0_2 = arith.constant 0 : index
    %1 = vector.load %arg1[%c0_1, %c0_2] : memref<8x8xf32, #tpu.memory_space<vmem>>, vector<8x8xf32>
    %cst = arith.constant dense<0.000000e+00> : vector<2x8xf32>
    %2 = tpu.matmul %0, %1, %cst {dimension_numbers = #tpu.dot_dimension_numbers<[1], [0], [0], [1], [0, 0, 1, 1], [], []>} : vector<2x8xf32>, vector<8x8xf32>, vector<2x8xf32> -> vector<2x8xf32>
    %c0_3 = arith.constant 0 : index
    %c0_4 = arith.constant 0 : index
    %3 = vector.load %arg2[%c0_3, %c0_4] : memref<1x8xf32, #tpu.memory_space<vmem>>, vector<1x8xf32>
    %4 = vector.broadcast %3 : vector<1x8xf32> to vector<2x8xf32>
    %5 = arith.addf %2, %4 : vector<2x8xf32>
    %cst_5 = arith.constant 0.000000e+00 : f32
    %6 = vector.broadcast %cst_5 : f32 to vector<2x8xf32>
    %7 = arith.maximumf %5, %6 : vector<2x8xf32>
    %c0_6 = arith.constant 0 : index
    %c0_7 = arith.constant 0 : index
    %8 = vector.load %arg3[%c0_6, %c0_7] : memref<8x4xf32, #tpu.memory_space<vmem>>, vector<8x4xf32>
    %cst_8 = arith.constant dense<0.000000e+00> : vector<2x4xf32>
    %9 = tpu.matmul %7, %8, %cst_8 {dimension_numbers = #tpu.dot_dimension_numbers<[1], [0], [0], [1], [0, 0, 1, 1], [], []>} : vector<2x8xf32>, vector<8x4xf32>, vector<2x4xf32> -> vector<2x4xf32>
    %c0_9 = arith.constant 0 : index
    %c0_10 = arith.constant 0 : index
    %10 = vector.load %arg4[%c0_9, %c0_10] : memref<1x4xf32, #tpu.memory_space<vmem>>, vector<1x4xf32>
    %11 = vector.broadcast %10 : vector<1x4xf32> to vector<2x4xf32>
    %12 = arith.addf %9, %11 : vector<2x4xf32>
    %13 = math.tanh %12 : vector<2x4xf32>
    %c0_11 = arith.constant 0 : index
    %c0_12 = arith.constant 0 : index
    %14 = vector.load %arg5[%c0_11, %c0_12] : memref<2x4xf32, #tpu.memory_space<vmem>>, vector<2x4xf32>
    tpu.vector_store %arg5[%c0_11, %c0_12], %13 {strides = array<i32>} : memref<2x4xf32, #tpu.memory_space<vmem>>, vector<2x4xf32>,
    return
  }
}

</mosaic_0001>

<llo_original>
// kernel: tpu_custom_call.1
$region0: #{tpu_custom_call.1}
  #allocation0 [shape = 'u32[]', space=smem, size = 0x4, offset = 0x4, fixed_abs, tag = 'smem constant byte address 0x4 - core index']
  #allocation1 [shape = 'u32[144,128]{1,0:T(1,128)}', space=vmem, size = 0x12000, scoped, tag = 'internal scratch']
  %s0 = inlined_call_operand.vmem [shape: f32[2,8], index: 0, kind: input, shape index: {}]
  %s1 = inlined_call_operand.vmem [shape: f32[8,8], index: 1, kind: input, shape index: {}]
  %s2 = inlined_call_operand.vmem [shape: f32[1,8], index: 2, kind: input, shape index: {}]
  %s3 = inlined_call_operand.vmem [shape: f32[8,4], index: 3, kind: input, shape index: {}]
  %s4 = inlined_call_operand.vmem [shape: f32[1,4], index: 4, kind: input, shape index: {}]
  %s5 = inlined_call_operand.hbm [shape: f32[2,4], index: 5, kind: output, shape index: {}]
  %s6 = sld [smem:[#allocation0]]
  $region30: #{tpu_custom_call.1} parent=0
    _
  %s8 = ssub.s32 1, %s6
  %s9 = scalar_select 0, %s8, %s6
  $region1: #{tpu_custom_call.1} parent=0
    #allocation2 [shape = 'u8[1024]{0}', space=vmem, size = 0x400, scoped, tag = 'output window, operand 0, single buffered']
    #allocation3 [shape = 's32[1]{0}', space=sflag, size = 0x4, scoped, tag = 'scoped memory for tpu_custom_call.1']
    %10 = vsyncpa [#allocation3], 0
    // Predicated region
    $region2: #{tpu_custom_call.1} parent=1 // pred_check
      _
    $region3: #{tpu_custom_call.1} parent=1 // pred_check_branch
      %12 = sbr.rel (0) target = $region5
    $region4: #{tpu_custom_call.1} parent=1 // pred_region
      _
    $region5: #{tpu_custom_call.1} parent=1 // pred_fallthru
      _
    // Predicated region
    $region6: #{tpu_custom_call.1} parent=1 // pred_check
      _
    $region7: #{tpu_custom_call.1} parent=1 // pred_check_branch
      %14 = sbr.rel (0) target = $region9
    $region8: #{tpu_custom_call.1} parent=1 // pred_region
      _
    $region9: #{tpu_custom_call.1} parent=1 // pred_fallthru
      _
    // Predicated region
    $region10: #{tpu_custom_call.1} parent=1 // pred_check
      _
    $region11: #{tpu_custom_call.1} parent=1 // pred_check_branch
      %16 = sbr.rel (0) target = $region13
    $region12: #{tpu_custom_call.1} parent=1 // pred_region
      _
    $region13: #{tpu_custom_call.1} parent=1 // pred_fallthru
      _
    // Predicated region
    $region14: #{tpu_custom_call.1} parent=1 // pred_check
      _
    $region15: #{tpu_custom_call.1} parent=1 // pred_check_branch
      %18 = sbr.rel (0) target = $region17
    $region16: #{tpu_custom_call.1} parent=1 // pred_region
      _
    $region17: #{tpu_custom_call.1} parent=1 // pred_fallthru
      _
    // Predicated region
    $region18: #{tpu_custom_call.1} parent=1 // pred_check
      _
    $region19: #{tpu_custom_call.1} parent=1 // pred_check_branch
      %20 = sbr.rel (0) target = $region21
    $region20: #{tpu_custom_call.1} parent=1 // pred_region
      _
    $region21: #{tpu_custom_call.1} parent=1 // pred_fallthru
      _
    %v21 = vld [vmem:[%s0] sm:$0x3]
    %v22 = vld [vmem:[%s1] sm:$0xff]
    %v23 = vld [vmem:[%s2] sm:$0x1]
    %v25 = vlaneseq
    %v26 = vshrl.u32 %v25, 7
    %v27 = vsub.s32 0, %v26
    %v28 = vrot.slane %v23, %v27
    %vm30 = vcmask 64512
    %v32 = vsel %vm30, %v21, 0
    %34 = vmatprep.subr.mxu0 0.0
    %35 = vmatpush1.msra.mxu0 %v22
    %36 = vmatprep.subr.mxu0 0.0
    %37 = vmatpush1.msra.mxu0 0.0
    %38 = vmatprep.subr.mxu0 0.0
    %39 = vmatpush1.msra.mxu0 0.0
    %40 = vmatprep.subr.mxu0 0.0
    %41 = vmatpush1.msra.mxu0 0.0
    %42 = vmatprep.subr.mxu0 0.0
    %43 = vmatpush1.msra.mxu0 0.0
    %44 = vmatprep.subr.mxu0 0.0
    %45 = vmatpush1.msra.mxu0 0.0
    %46 = vmatprep.subr.mxu0 0.0
    %47 = vmatpush1.msra.mxu0 0.0
    %48 = vmatprep.subr.mxu0 0.0
    %49 = vmatpush1.msra.mxu0 0.0
    %50 = vmatprep.subr.mxu0 0.0
    %51 = vmatpush1.msra.mxu0 0.0
    %52 = vmatprep.subr.mxu0 0.0
    %53 = vmatpush1.msra.mxu0 0.0
    %54 = vmatprep.subr.mxu0 0.0
    %55 = vmatpush1.msra.mxu0 0.0
    %56 = vmatprep.subr.mxu0 0.0
    %57 = vmatpush1.msra.mxu0 0.0
    %58 = vmatprep.subr.mxu0 0.0
    %59 = vmatpush1.msra.mxu0 0.0
    %60 = vmatprep.subr.mxu0 0.0
    %61 = vmatpush1.msra.mxu0 0.0
    %62 = vmatprep.subr.mxu0 0.0
    %63 = vmatpush1.msra.mxu0 0.0
    %64 = vmatprep.subr.mxu0 0.0
    %65 = vmatpush1.msra.mxu0 0.0
    %66 = vmatprep.subr.mxu0 0.0
    %67 = vmatpush1.msra.mxu0 0.0
    %68 = vmatprep.subr.mxu0 0.0
    %69 = vmatpush1.msra.mxu0 0.0
    %70 = vmatprep.subr.mxu0 0.0
    %71 = vmatpush1.msra.mxu0 0.0
    %72 = vmatprep.subr.mxu0 0.0
    %73 = vmatpush1.msra.mxu0 0.0
    %74 = vmatprep.subr.mxu0 0.0
    %75 = vmatpush1.msra.mxu0 0.0
    %76 = vmatprep.subr.mxu0 0.0
    %77 = vmatpush1.msra.mxu0 0.0
    %78 = vmatprep.subr.mxu0 0.0
    %79 = vmatpush1.msra.mxu0 0.0
    %80 = vmatprep.subr.mxu0 0.0
    %81 = vmatpush1.msra.mxu0 0.0
    %82 = vmatprep.subr.mxu0 0.0
    %83 = vmatpush1.msra.mxu0 0.0
    %84 = vmatprep.subr.mxu0 0.0
    %85 = vmatpush1.msra.mxu0 0.0
    %86 = vmatprep.subr.mxu0 0.0
    %87 = vmatpush1.msra.mxu0 0.0
    %88 = vmatprep.subr.mxu0 0.0
    %89 = vmatpush1.msra.mxu0 0.0
    %90 = vmatprep.subr.mxu0 0.0
    %91 = vmatpush1.msra.mxu0 0.0
    %92 = vmatprep.subr.mxu0 0.0
    %93 = vmatpush1.msra.mxu0 0.0
    %94 = vmatprep.subr.mxu0 0.0
    %95 = vmatpush1.msra.mxu0 0.0
    %96 = vmatprep.subr.mxu0 0.0
    %97 = vmatpush1.msra.mxu0 0.0
    %98 = vmatprep.mubr.f32.mxu0 0.0
    %99 = vmatmul.mubr.f32.gmra.mrb[0].mxu0 %v32
    %v100 = vpop.f32.mrb[0].mxu0
    %v101 = vadd.f32 %v28, %v100
    %v102 = vpop.f32.mrb[0].mxu0
    %103 = vdwg.mxu0
    %v104 = vmax.f32 %v101, 0.0
    %v105 = vld [vmem:[%s3] sm:$0xff]
    %v106 = vld [vmem:[%s4] sm:$0x1]
    %v108 = vlaneseq
    %v109 = vshrl.u32 %v108, 7
    %v110 = vsub.s32 0, %v109
    %v111 = vrot.slane %v106, %v110
    %v114 = vsel %vm30, %v104, 0
    %116 = vmatprep.subr.mxu0 0.0
    %117 = vmatpush1.msra.mxu0 %v105
    %118 = vmatprep.subr.mxu0 0.0
    %119 = vmatpush1.msra.mxu0 0.0
    %120 = vmatprep.subr.mxu0 0.0
    %121 = vmatpush1.msra.mxu0 0.0
    %122 = vmatprep.subr.mxu0 0.0
    %123 = vmatpush1.msra.mxu0 0.0
    %124 = vmatprep.subr.mxu0 0.0
    %125 = vmatpush1.msra.mxu0 0.0
    %126 = vmatprep.subr.mxu0 0.0
    %127 = vmatpush1.msra.mxu0 0.0
    %128 = vmatprep.subr.mxu0 0.0
    %129 = vmatpush1.msra.mxu0 0.0
    %130 = vmatprep.subr.mxu0 0.0
    %131 = vmatpush1.msra.mxu0 0.0
    %132 = vmatprep.subr.mxu0 0.0
    %133 = vmatpush1.msra.mxu0 0.0
    %134 = vmatprep.subr.mxu0 0.0
    %135 = vmatpush1.msra.mxu0 0.0
    %136 = vmatprep.subr.mxu0 0.0
    %137 = vmatpush1.msra.mxu0 0.0
    %138 = vmatprep.subr.mxu0 0.0
    %139 = vmatpush1.msra.mxu0 0.0
    %140 = vmatprep.subr.mxu0 0.0
    %141 = vmatpush1.msra.mxu0 0.0
    %142 = vmatprep.subr.mxu0 0.0
    %143 = vmatpush1.msra.mxu0 0.0
    %144 = vmatprep.subr.mxu0 0.0
    %145 = vmatpush1.msra.mxu0 0.0
    %146 = vmatprep.subr.mxu0 0.0
    %147 = vmatpush1.msra.mxu0 0.0
    %148 = vmatprep.subr.mxu0 0.0
    %149 = vmatpush1.msra.mxu0 0.0
    %150 = vmatprep.subr.mxu0 0.0
    %151 = vmatpush1.msra.mxu0 0.0
    %152 = vmatprep.subr.mxu0 0.0
    %153 = vmatpush1.msra.mxu0 0.0
    %154 = vmatprep.subr.mxu0 0.0
    %155 = vmatpush1.msra.mxu0 0.0
    %156 = vmatprep.subr.mxu0 0.0
    %157 = vmatpush1.msra.mxu0 0.0
    %158 = vmatprep.subr.mxu0 0.0
    %159 = vmatpush1.msra.mxu0 0.0
    %160 = vmatprep.subr.mxu0 0.0
    %161 = vmatpush1.msra.mxu0 0.0
    %162 = vmatprep.subr.mxu0 0.0
    %163 = vmatpush1.msra.mxu0 0.0
    %164 = vmatprep.subr.mxu0 0.0
    %165 = vmatpush1.msra.mxu0 0.0
    %166 = vmatprep.subr.mxu0 0.0
    %167 = vmatpush1.msra.mxu0 0.0
    %168 = vmatprep.subr.mxu0 0.0
    %169 = vmatpush1.msra.mxu0 0.0
    %170 = vmatprep.subr.mxu0 0.0
    %171 = vmatpush1.msra.mxu0 0.0
    %172 = vmatprep.subr.mxu0 0.0
    %173 = vmatpush1.msra.mxu0 0.0
    %174 = vmatprep.subr.mxu0 0.0
    %175 = vmatpush1.msra.mxu0 0.0
    %176 = vmatprep.subr.mxu0 0.0
    %177 = vmatpush1.msra.mxu0 0.0
    %178 = vmatprep.subr.mxu0 0.0
    %179 = vmatpush1.msra.mxu0 0.0
    %180 = vmatprep.mubr.f32.mxu0 0.0
    %181 = vmatmul.mubr.f32.gmra.mrb[0].mxu0 %v114
    %v182 = vpop.f32.mrb[0].mxu0
    %v183 = vadd.f32 %v111, %v182
    %v184 = vpop.f32.mrb[0].mxu0
    %185 = vdwg.mxu0
    %v186 = vtanh.pop %v183
    %vm187 = vcmask 25600
    %188 = vst.msk [vmem:[#allocation2] sm:$0x3] %vm187, %v186
    // Predicated region
    $region22: #{tpu_custom_call.1} parent=1 // pred_check
      _
    $region23: #{tpu_custom_call.1} parent=1 // pred_check_branch
      %190 = sbr.rel (0) target = $region25
    $region24: #{tpu_custom_call.1} parent=1 // pred_region
      %s192 = ssub.s32 32, 32
      %193 = vsyncadd [#allocation3], %s192
      %s195 = sshll.u32 [#allocation2], 4
      %s196 = int_to_ptr.vmem [resolvable:$true] %s195
      %198 = dma.vmem_to_hbm [thread:$0]  %s196, 32, %s5, [#allocation3]
    $region25: #{tpu_custom_call.1} parent=1 // pred_fallthru
      _
    // Predicated region
    $region26: #{tpu_custom_call.1} parent=1 // pred_check
      _
    $region27: #{tpu_custom_call.1} parent=1 // pred_check_branch
      %200 = sbr.rel (0) target = $region29
    $region28: #{tpu_custom_call.1} parent=1 // pred_region
      %201 = dma.done [#allocation3], 32
    $region29: #{tpu_custom_call.1} parent=1 // pred_fallthru
      _
    %202 = vsyncpa [#allocation3], 1

</llo_original>
